<compile_context>
chip_gen: v7x
topology: tpu7x:2x2x1
jax: 0.10.0
libtpu: 0.0.40
codegen_flags: <defaults>
</compile_context>

<pallas_src>
import functools

import jax
import jax.numpy as jnp
from jax.experimental import pallas as pl
from jax.experimental.pallas import tpu as pltpu


# ----------------------------------------------------------------------------
# Kernel
# ----------------------------------------------------------------------------
def attention_kernel(x_ref, wblk_ref, bblk_ref, cvblk_ref, expand_ref, o_ref, *, S, C):
    """Processes one batch tile.

    x_ref:      (1, Bt*S, C*I)  packed input rows (classes+features on lanes)
    wblk_ref:   (C*I, C*O)      block-diagonal Linear weight (f32 or bf16)
    bblk_ref:   (1, C*O)        Linear bias tiled over classes (f32)
    cvblk_ref:  (C*O, C)        context vector folded into a block matrix (f32)
    expand_ref: (C, C*I)        0/1 matrix repeating each class over I lanes (f32)
    o_ref:      (1, Bt, C*I)    packed, lane-dense output slab
    """
    xp = x_ref[0]                                     # (rows, C*I)
    rows, CI = xp.shape
    Bt = rows // S

    wblk = wblk_ref[...]
    xm = xp if xp.dtype == wblk.dtype else xp.astype(wblk.dtype)

    # hidden_representation = tanh(Linear(input)) : one full-width MXU matmul
    # (block-diagonal weight), f32 accumulate.
    h = jnp.tanh(jnp.dot(xm, wblk, preferred_element_type=jnp.float32)
                 + bblk_ref[...])                     # (rows, C*O) f32

    # attention_logits[b*S+s, c] = sum_o h[., c*O+o] * cv[c, o]   (MXU matmul)
    logits = jnp.dot(h, cvblk_ref[...], preferred_element_type=jnp.float32)  # (rows, C)

    # max over sentences (dim=-2, keepdim), then softmax over classes (dim=-1).
    l3 = logits.reshape(Bt, S, C)
    shifted = l3 - jnp.max(l3, axis=1, keepdims=True)
    m = jnp.max(shifted, axis=-1, keepdims=True)
    e = jnp.exp(shifted - m)
    denom = jnp.sum(e, axis=-1, keepdims=True)
    attn = e * pl.reciprocal(denom, approx=True)      # (Bt, S, C)

    # Broadcast attn[b,s,c] over the I feature lanes of class c via a 0/1 matmul.
    attn_exp = jnp.dot(attn.reshape(rows, C), expand_ref[...],
                       preferred_element_type=jnp.float32)        # (rows, C*I)

    weighted = attn_exp * xp.astype(jnp.float32)                  # (rows, C*I) f32
    out = jnp.sum(weighted.reshape(Bt, S, CI), axis=1)            # contiguous sublane reduce
    o_ref[0] = out.astype(o_ref.dtype)


# ----------------------------------------------------------------------------
# Wrapper
# ----------------------------------------------------------------------------
def _is_single_tensorcore():
    try:
        kind = jax.devices()[0].device_kind.lower()
    except Exception:
        return False
    # v5e / v6e ("lite") parts have one TensorCore; v4 / v5p / v7x have two.
    return ("lite" in kind) or ("v5e" in kind) or ("v6e" in kind)


def _padded_bytes(shape, dtype):
    """VMEM footprint of a block, honoring (sublane, lane) tile padding."""
    itemsize = jnp.dtype(dtype).itemsize
    if len(shape) < 2:
        lanes = (-(-int(shape[0]) // 128) * 128) if shape else 1
        return lanes * itemsize
    sub_tile = max(8, 32 // itemsize)                 # 8 for f32, 16 for bf16
    sub = -(-int(shape[-2]) // sub_tile) * sub_tile
    lane = -(-int(shape[-1]) // 128) * 128
    lead = 1
    for d in shape[:-2]:
        lead *= int(d)
    return lead * sub * lane * itemsize


def attention_per_label_sentence_level(x, w, b, cv, *, matmul_in_bf16=True,
                                       x_in_bf16=False):
    """Forward pass of AttentionPerLabelSentenceLevel.

    x:  (B, S, C, I) input_tensor; w: (I, O) Linear weight (transposed);
    b:  (1, O) bias;  cv: (C, O) context_vector.  Returns (B, C, I).
    """
    B, S, C, I = x.shape
    O = w.shape[1]
    out_dtype = x.dtype

    if C * I > 1024 or C * O > 1024:
        # TODO(synk): grouped class packing (P | C, P < C) for large C*I / C*O.
        raise NotImplementedError("class-packed kernel requires C*I <= 1024 and C*O <= 1024")

    x_store_dtype = jnp.bfloat16 if x_in_bf16 else x.dtype
    mm_dtype = jnp.bfloat16 if matmul_in_bf16 else jnp.float32

    # ---- batch-tile (bt) selection: TPU-generation aware --------------------
    single_tc = _is_single_tensorcore()
    per_batch_bytes = S * C * I * jnp.dtype(x_store_dtype).itemsize
    target_bytes = (4 << 20) if single_tc else (1 << 20)
    bt = max(1, target_bytes // per_batch_bytes)
    if not single_tc:
        bt = min(bt, max(1, pl.cdiv(B, 4)))      # >= 4 grid steps (>= 2 per TensorCore)
    bt = max(1, min(bt, B))
    if bt >= 8:
        bt -= bt % 8                             # sublane-aligned (bt, C*I) output slabs

    def vmem_bytes(bt_):
        rows = bt_ * S
        est = 0
        est += 2 * _padded_bytes((rows, C * I), x_store_dtype)   # x block (double-buffered)
        est += 2 * _padded_bytes((bt_, C * I), out_dtype)        # out block (double-buffered)
        est += 2 * _padded_bytes((C * I, C * O), mm_dtype)       # block-diag weight
        est += 2 * _padded_bytes((1, C * O), jnp.float32)        # bias
        est += 2 * _padded_bytes((C * O, C), jnp.float32)        # cv block matrix
        est += 2 * _padded_bytes((C, C * I), jnp.float32)        # expansion matrix
        est += _padded_bytes((rows, C * O), jnp.float32)         # h
        est += 3 * _padded_bytes((rows, C * I), jnp.float32)     # attn_exp / weighted / casts
        return est

    budget = (48 << 20) if single_tc else (24 << 20)
    while bt > 1 and vmem_bytes(bt) > budget:
        bt = bt - 8 if bt > 8 else bt - 1
        bt = max(1, bt)
        if bt >= 8:
            bt -= bt % 8

    num_tiles = pl.cdiv(B, bt)
    B_pad = num_tiles * bt

    # ---- wrapper-side layout plumbing (contiguous reshapes only) ------------
    x_flat = x.reshape(B, S, C * I).astype(x_store_dtype)
    if B_pad != B:
        # Zero padding is numerically safe: tanh(bias) -> finite softmax and the
        # weighted sum of x = 0 gives zero rows, which are sliced off below.
        x_flat = jnp.pad(x_flat, ((0, B_pad - B), (0, 0), (0, 0)))
    x_tiles = x_flat.reshape(num_tiles, bt * S, C * I)

    eye = jnp.eye(C, dtype=jnp.float32)
    w_blk = jnp.kron(eye, w.astype(jnp.float32)).astype(mm_dtype)      # (C*I, C*O)
    b_blk = jnp.tile(b.astype(jnp.float32), (1, C))                    # (1, C*O)
    cv_blk = (eye[:, None, :] * cv.astype(jnp.float32)[:, :, None])    # (C, O, C)
    cv_blk = cv_blk.reshape(C * O, C)
    expand = jnp.repeat(eye, I, axis=1)                                # (C, C*I) 0/1

    kernel = functools.partial(attention_kernel, S=S, C=C)

    rows_total = B_pad * S
    cost = pl.CostEstimate(
        flops=int(2 * rows_total * (C * I) * (C * O)       # block-diag Linear
                  + 2 * rows_total * (C * O) * C            # logits
                  + 2 * rows_total * C * (C * I)            # attention broadcast
                  + 4 * rows_total * C * I),                # elementwise
        transcendentals=int(rows_total * C * O + rows_total * C),   # tanh + exp
        bytes_accessed=int(rows_total * C * I * jnp.dtype(x_store_dtype).itemsize
                           + B_pad * C * I * jnp.dtype(out_dtype).itemsize
                           + (C * I) * (C * O) * jnp.dtype(mm_dtype).itemsize
                           + (C * O + C * O * C + C * C * I) * 4),
    )

    vmem_limit = int(min(max(2 * vmem_bytes(bt), 32 << 20),
                         (100 << 20) if single_tc else (48 << 20)))

    out = pl.pallas_call(
        kernel,
        out_shape=jax.ShapeDtypeStruct((num_tiles, bt, C * I), out_dtype),
        grid_spec=pltpu.PrefetchScalarGridSpec(
            num_scalar_prefetch=0,
            grid=(num_tiles,),
            in_specs=[
                pl.BlockSpec((1, bt * S, C * I), lambda t: (t, 0, 0)),
                pl.BlockSpec((C * I, C * O), lambda t: (0, 0)),
                pl.BlockSpec((1, C * O), lambda t: (0, 0)),
                pl.BlockSpec((C * O, C), lambda t: (0, 0)),
                pl.BlockSpec((C, C * I), lambda t: (0, 0)),
            ],
            out_specs=pl.BlockSpec((1, bt, C * I), lambda t: (t, 0, 0)),
        ),
        compiler_params=pltpu.CompilerParams(
            dimension_semantics=("parallel",),
            vmem_limit_bytes=vmem_limit,
        ),
        cost_estimate=cost,
    )(x_tiles, w_blk, b_blk, cv_blk, expand)

    return out.reshape(B_pad, C * I)[:B].reshape(B, C, I)


# ----------------------------------------------------------------------------
# Pure-JAX reference (mirrors the PyTorch forward exactly, f32 throughout)
# ----------------------------------------------------------------------------
def reference(x, w, b, cv):
    h = jnp.tanh(jnp.einsum("bsci,io->bsco", x, w) + b[0])
    logits = jnp.sum(h * cv[None, None, :, :], axis=-1)          # (B, S, C)
    logits_max = jnp.max(logits, axis=-2, keepdims=True)         # (B, 1, C)
    attn = jax.nn.softmax(logits - logits_max, axis=-1)          # (B, S, C)
    return jnp.sum(attn[..., None] * x, axis=1)                  # (B, C, I)


if __name__ == "__main__":
    # batch=4, num_sentences=8, num_classes=8, input_size=32, output_size=32.
    B, S, C, I, O = 4, 8, 8, 32, 32

    key = jax.random.PRNGKey(0)
    kx, kw, kb, kc = jax.random.split(key, 4)
    x = jax.random.normal(kx, (B, S, C, I), dtype=jnp.float32)
    w = jax.random.normal(kw, (I, O), dtype=jnp.float32) * 0.1   # Linear weight (transposed)
    b = jax.random.normal(kb, (1, O), dtype=jnp.float32) * 0.1   # Linear bias
    cv = jax.random.normal(kc, (C, O), dtype=jnp.float32)        # context_vector

    ref = reference(x, w, b, cv)

    # 1) default path: bf16 MXU operands, f32 x in HBM, f32 accumulation.
    out = jax.block_until_ready(attention_per_label_sentence_level(x, w, b, cv))
    assert out.shape == (B, C, I)
    assert jnp.allclose(out, ref, atol=5e-2, rtol=5e-2), "bf16-matmul path mismatch"

    # 2) full-f32 path (tight parity; only the EUP approx reciprocal differs).
    out_f32 = jax.block_until_ready(
        attention_per_label_sentence_level(x, w, b, cv, matmul_in_bf16=False))
    assert jnp.allclose(out_f32, ref, atol=5e-3, rtol=5e-3), "f32 path mismatch"

    # 3) ragged batch exercises the zero-pad / slice-off path.
    out3 = jax.block_until_ready(
        attention_per_label_sentence_level(x[:3], w, b, cv))
    ref3 = reference(x[:3], w, b, cv)
    assert out3.shape == (3, C, I)
    assert jnp.allclose(out3, ref3, atol=5e-2, rtol=5e-2), "padded path mismatch"

    # 4) bf16 x resident in HBM (halves the dominant DMA stream).
    out_bf = jax.block_until_ready(
        attention_per_label_sentence_level(x, w, b, cv, x_in_bf16=True))
    assert jnp.allclose(out_bf, ref, atol=7.5e-2, rtol=7.5e-2), "bf16-x path mismatch"

    print("KERNEL_OK")
</pallas_src>

<mosaic_0001>
module attributes {stable_mosaic.version = 11 : i64} {
  func.func @attention_kernel(%arg0: i32, %arg1: memref<1x8x256xf32, #tpu.memory_space<vmem>>, %arg2: memref<256x256xbf16, #tpu.memory_space<vmem>>, %arg3: memref<1x256xf32, #tpu.memory_space<vmem>>, %arg4: memref<256x8xf32, #tpu.memory_space<vmem>>, %arg5: memref<8x256xf32, #tpu.memory_space<vmem>>, %arg6: memref<1x1x256xf32, #tpu.memory_space<vmem>>) attributes {dimension_semantics = [#tpu.dimension_semantics<parallel>], iteration_bounds = array<i64: 4>, scalar_prefetch = 0 : i64, scratch_operands = 0 : i64, tpu.core_type = #tpu.core_type<tc>, window_params = [{transform_indices = @transform_0, window_bounds = array<i64: 1, 8, 256>}, {pipeline_mode = #tpu.pipeline_mode<synchronous>, transform_indices = @transform_1, window_bounds = array<i64: 256, 256>}, {pipeline_mode = #tpu.pipeline_mode<synchronous>, transform_indices = @transform_2, window_bounds = array<i64: 1, 256>}, {pipeline_mode = #tpu.pipeline_mode<synchronous>, transform_indices = @transform_3, window_bounds = array<i64: 256, 8>}, {pipeline_mode = #tpu.pipeline_mode<synchronous>, transform_indices = @transform_4, window_bounds = array<i64: 8, 256>}, {transform_indices = @transform_5, window_bounds = array<i64: 1, 1, 256>}]} {
    %c0 = arith.constant 0 : index
    %c0_0 = arith.constant 0 : index
    %c0_1 = arith.constant 0 : index
    %0 = vector.load %arg1[%c0, %c0_0, %c0_1] : memref<1x8x256xf32, #tpu.memory_space<vmem>>, vector<1x8x256xf32>
    %1 = vector.shape_cast %0 : vector<1x8x256xf32> to vector<8x256xf32>
    %c0_2 = arith.constant 0 : index
    %c0_3 = arith.constant 0 : index
    %2 = vector.load %arg2[%c0_2, %c0_3] : memref<256x256xbf16, #tpu.memory_space<vmem>>, vector<256x256xbf16>
    %3 = arith.truncf %1 : vector<8x256xf32> to vector<8x256xbf16>
    %cst = arith.constant dense<0.000000e+00> : vector<8x256xf32>
    %4 = tpu.matmul %3, %2, %cst {dimension_numbers = #tpu.dot_dimension_numbers<[1], [0], [0], [1], [0, 0, 1, 1], [], []>} : vector<8x256xbf16>, vector<256x256xbf16>, vector<8x256xf32> -> vector<8x256xf32>
    %c0_4 = arith.constant 0 : index
    %c0_5 = arith.constant 0 : index
    %5 = vector.load %arg3[%c0_4, %c0_5] : memref<1x256xf32, #tpu.memory_space<vmem>>, vector<1x256xf32>
    %6 = vector.broadcast %5 : vector<1x256xf32> to vector<8x256xf32>
    %7 = arith.addf %4, %6 : vector<8x256xf32>
    %8 = math.tanh %7 : vector<8x256xf32>
    %c0_6 = arith.constant 0 : index
    %c0_7 = arith.constant 0 : index
    %9 = vector.load %arg4[%c0_6, %c0_7] : memref<256x8xf32, #tpu.memory_space<vmem>>, vector<256x8xf32>
    %cst_8 = arith.constant dense<0.000000e+00> : vector<8x8xf32>
    %10 = tpu.matmul %8, %9, %cst_8 {dimension_numbers = #tpu.dot_dimension_numbers<[1], [0], [0], [1], [0, 0, 1, 1], [], []>} : vector<8x256xf32>, vector<256x8xf32>, vector<8x8xf32> -> vector<8x8xf32>
    %11 = vector.shape_cast %10 : vector<8x8xf32> to vector<1x8x8xf32>
    %cst_9 = arith.constant dense<0xFF800000> : vector<1x8xf32>
    %12 = vector.multi_reduction <maximumf>, %11, %cst_9 [1] : vector<1x8x8xf32> to vector<1x8xf32>
    %13 = vector.shape_cast %12 : vector<1x8xf32> to vector<1x1x8xf32>
    %14 = vector.broadcast %13 : vector<1x1x8xf32> to vector<1x8x8xf32>
    %15 = arith.subf %11, %14 : vector<1x8x8xf32>
    %cst_10 = arith.constant dense<0xFF800000> : vector<1x8xf32>
    %16 = vector.multi_reduction <maximumf>, %15, %cst_10 [2] : vector<1x8x8xf32> to vector<1x8xf32>
    %17 = vector.shape_cast %16 : vector<1x8xf32> to vector<1x8x1xf32>
    %18 = vector.broadcast %17 : vector<1x8x1xf32> to vector<1x8x8xf32>
    %19 = arith.subf %15, %18 : vector<1x8x8xf32>
    %20 = math.exp %19 : vector<1x8x8xf32>
    %cst_11 = arith.constant dense<0.000000e+00> : vector<1x8xf32>
    %21 = vector.multi_reduction <add>, %20, %cst_11 [2] : vector<1x8x8xf32> to vector<1x8xf32>
    %22 = vector.shape_cast %21 : vector<1x8xf32> to vector<1x8x1xf32>
    %23 = tpu.reciprocal %22 {approx = true} : vector<1x8x1xf32> -> vector<1x8x1xf32>
    %24 = vector.broadcast %23 : vector<1x8x1xf32> to vector<1x8x8xf32>
    %25 = arith.mulf %20, %24 : vector<1x8x8xf32>
    %26 = vector.shape_cast %25 : vector<1x8x8xf32> to vector<8x8xf32>
    %c0_12 = arith.constant 0 : index
    %c0_13 = arith.constant 0 : index
    %27 = vector.load %arg5[%c0_12, %c0_13] : memref<8x256xf32, #tpu.memory_space<vmem>>, vector<8x256xf32>
    %cst_14 = arith.constant dense<0.000000e+00> : vector<8x256xf32>
    %28 = tpu.matmul %26, %27, %cst_14 {dimension_numbers = #tpu.dot_dimension_numbers<[1], [0], [0], [1], [0, 0, 1, 1], [], []>} : vector<8x8xf32>, vector<8x256xf32>, vector<8x256xf32> -> vector<8x256xf32>
    %29 = arith.mulf %28, %1 : vector<8x256xf32>
    %30 = vector.shape_cast %29 : vector<8x256xf32> to vector<1x8x256xf32>
    %cst_15 = arith.constant dense<0.000000e+00> : vector<1x256xf32>
    %31 = vector.multi_reduction <add>, %30, %cst_15 [1] : vector<1x8x256xf32> to vector<1x256xf32>
    %c0_16 = arith.constant 0 : index
    %c0_17 = arith.constant 0 : index
    %c0_18 = arith.constant 0 : index
    %32 = vector.load %arg6[%c0_16, %c0_17, %c0_18] : memref<1x1x256xf32, #tpu.memory_space<vmem>>, vector<1x1x256xf32>
    %33 = vector.shape_cast %32 : vector<1x1x256xf32> to vector<1x256xf32>
    %34 = vector.shape_cast %31 : vector<1x256xf32> to vector<1x1x256xf32>
    tpu.vector_store %arg6[%c0_16, %c0_17, %c0_18], %34 {strides = array<i32>} : memref<1x1x256xf32, #tpu.memory_space<vmem>>, vector<1x1x256xf32>,
    return
  }
  func.func @transform_0(%arg0: i32) -> (i32, i32, i32) {
    %c0_i32 = arith.constant 0 : i32
    %c0_i32_0 = arith.constant 0 : i32
    %c0_i32_1 = arith.constant 0 : i32
    return %arg0, %c0_i32, %c0_i32_0 : i32, i32, i32
  }
  func.func @transform_1(%arg0: i32) -> (i32, i32) {
    %c0_i32 = arith.constant 0 : i32
    %c0_i32_0 = arith.constant 0 : i32
    %c0_i32_1 = arith.constant 0 : i32
    return %c0_i32, %c0_i32_0 : i32, i32
  }
  func.func @transform_2(%arg0: i32) -> (i32, i32) {
    %c0_i32 = arith.constant 0 : i32
    %c0_i32_0 = arith.constant 0 : i32
    %c0_i32_1 = arith.constant 0 : i32
    return %c0_i32, %c0_i32_0 : i32, i32
  }
  func.func @transform_3(%arg0: i32) -> (i32, i32) {
    %c0_i32 = arith.constant 0 : i32
    %c0_i32_0 = arith.constant 0 : i32
    %c0_i32_1 = arith.constant 0 : i32
    return %c0_i32, %c0_i32_0 : i32, i32
  }
  func.func @transform_4(%arg0: i32) -> (i32, i32) {
    %c0_i32 = arith.constant 0 : i32
    %c0_i32_0 = arith.constant 0 : i32
    %c0_i32_1 = arith.constant 0 : i32
    return %c0_i32, %c0_i32_0 : i32, i32
  }
  func.func @transform_5(%arg0: i32) -> (i32, i32, i32) {
    %c0_i32 = arith.constant 0 : i32
    %c0_i32_0 = arith.constant 0 : i32
    %c0_i32_1 = arith.constant 0 : i32
    return %arg0, %c0_i32, %c0_i32_0 : i32, i32, i32
  }
}

</mosaic_0001>

<llo_original>
// kernel: tpu_custom_call.1
$region0: #{tpu_custom_call.1}
  #allocation0 [shape = 'u32[]', space=smem, size = 0x4, offset = 0x4, fixed_abs, tag = 'smem constant byte address 0x4 - core index']
  #allocation1 [shape = 'u32[144,128]{1,0:T(1,128)}', space=vmem, size = 0x12000, scoped, tag = 'internal scratch']
  %s0 = inlined_call_operand.hbm [shape: f32[4,8,256], index: 0, kind: input, shape index: {}]
  %s1 = inlined_call_operand.vmem [shape: bf16[256,256], index: 1, kind: input, shape index: {}]
  %s2 = inlined_call_operand.vmem [shape: f32[1,256], index: 2, kind: input, shape index: {}]
  %s3 = inlined_call_operand.vmem [shape: f32[256,8], index: 3, kind: input, shape index: {}]
  %s4 = inlined_call_operand.vmem [shape: f32[8,256], index: 4, kind: input, shape index: {}]
  %s5 = inlined_call_operand.hbm [shape: f32[4,1,256], index: 5, kind: output, shape index: {}]
  %s6 = sld [smem:[#allocation0]]
  $region57: #{tpu_custom_call.1} parent=0
    _
  %s8 = ssub.s32 1, %s6
  %s9 = scalar_select 0, %s8, %s6
  $region1: #{tpu_custom_call.1} parent=0
    #allocation2 [shape = 'u8[16384]{0}', space=vmem, size = 0x4000, scoped, tag = 'input window, operand 0']
    #allocation3 [shape = 's32[2]{0}', space=sflag, size = 0x8, scoped, tag = 'scoped memory for tpu_custom_call.1']
    #allocation4 [shape = 's32[2]{0}', space=sflag, size = 0x8, scoped, tag = 'scoped memory for tpu_custom_call.1']
    #allocation5 [shape = 'u8[2048]{0}', space=vmem, size = 0x800, scoped, tag = 'output window, operand 0']
    %10 = vsyncpa [#allocation3], 0
    %s11 = scalar_lea.sflag [#allocation3], 1
    %12 = vsyncpa %s11, 0
    %13 = vsyncpa [#allocation4], 0
    %s14 = scalar_lea.sflag [#allocation4], 1
    %15 = vsyncpa %s14, 0
    loop: start=0, step=1, limit=6
    $region2: #{tpu_custom_call.1} parent=1 // loop_pre_header
      _
    $region3: #{tpu_custom_call.1} parent=1 // loop_header
      %s17 = sphi 0, %s21
      %p18 = scmp.ge.s32.totalorder %s17, 6
      %s27 = sphi 0, %s29
      %s30 = sphi 0, %s27
      %s31 = sphi 0, %s30
      %s47 = sphi 0, %s31
      %s51 = sphi 0, %s51
      %s53 = sphi 0, %s51
      %s54 = sphi 0, %s53
      %s68 = sphi 0, %s54
      %s72 = sphi 0, %s72
      %s74 = sphi 0, %s72
      %s75 = sphi 0, %s74
      %s89 = sphi 0, %s75
      %s93 = sphi 0, %s93
      %s95 = sphi 0, %s93
      %s96 = sphi 0, %s95
      %s110 = sphi 0, %s96
      %s114 = sphi 0, %s114
      %s116 = sphi 0, %s114
      %s117 = sphi 0, %s116
      %s131 = sphi 0, %s117
      %s137 = sphi 0, %s139
      %s140 = sphi 0, %s137
      %s141 = sphi 0, %s140
      %s157 = sphi 0, %s141
    $region4: #{tpu_custom_call.1} parent=1 // loop_header_branch
      %20 = sbr.rel (%p18) target = $region8
    $region5: #{tpu_custom_call.1} parent=1 // loop_body
      %s22 = ssub.s32 %s17, 1
      %s23 = ssub.s32 %s17, 2
      %s24 = sadd.s32 %s17, 1
      %s25 = ssub.s32 %s17, %s24
      %p26 = scmp.eq.s32.totalorder %s25, 0
      %s28 = sadd.s32 %s27, 1
      %s29 = scalar_select %p26, %s27, %s28
      %p32 = pneg %p26
      %p33 = scmp.eq.s32.totalorder %s17, 3
      %p34 = por %p32, %p33
      %p35 = scmp.ne.s32.totalorder %s27, %s30
      %p36 = scmp.eq.s32.totalorder %s17, 0
      %p37 = por %p35, %p36
      %p38 = scmp.ne.s32.totalorder %s27, %s30
      %p39 = scmp.eq.s32.totalorder %s22, 3
      %p40 = por %p38, %p39
      %p41 = scmp.ne.s32.totalorder %s30, %s31
      %p42 = scmp.eq.s32.totalorder %s22, 0
      %p43 = por %p41, %p42
      %p44 = scmp.ne.s32.totalorder %s30, %s31
      %p45 = scmp.eq.s32.totalorder %s23, 3
      %p46 = por %p44, %p45
      %p48 = scmp.ne.s32.totalorder %s31, %s47
      %p49 = scmp.eq.s32.totalorder %s23, 0
      %p50 = por %p48, %p49
      %s52 = sadd.s32 %s51, 1
      %p55 = scmp.eq.s32.totalorder %s17, 3
      %p56 = scmp.ne.s32.totalorder %s51, %s53
      %p57 = scmp.eq.s32.totalorder %s17, 0
      %p58 = por %p56, %p57
      %p59 = scmp.ne.s32.totalorder %s51, %s53
      %p60 = scmp.eq.s32.totalorder %s22, 3
      %p61 = por %p59, %p60
      %p62 = scmp.ne.s32.totalorder %s53, %s54
      %p63 = scmp.eq.s32.totalorder %s22, 0
      %p64 = por %p62, %p63
      %p65 = scmp.ne.s32.totalorder %s53, %s54
      %p66 = scmp.eq.s32.totalorder %s23, 3
      %p67 = por %p65, %p66
      %p69 = scmp.ne.s32.totalorder %s54, %s68
      %p70 = scmp.eq.s32.totalorder %s23, 0
      %p71 = por %p69, %p70
      %s73 = sadd.s32 %s72, 1
      %p76 = scmp.eq.s32.totalorder %s17, 3
      %p77 = scmp.ne.s32.totalorder %s72, %s74
      %p78 = scmp.eq.s32.totalorder %s17, 0
      %p79 = por %p77, %p78
      %p80 = scmp.ne.s32.totalorder %s72, %s74
      %p81 = scmp.eq.s32.totalorder %s22, 3
      %p82 = por %p80, %p81
      %p83 = scmp.ne.s32.totalorder %s74, %s75
      %p84 = scmp.eq.s32.totalorder %s22, 0
      %p85 = por %p83, %p84
      %p86 = scmp.ne.s32.totalorder %s74, %s75
      %p87 = scmp.eq.s32.totalorder %s23, 3
      %p88 = por %p86, %p87
      %p90 = scmp.ne.s32.totalorder %s75, %s89
      %p91 = scmp.eq.s32.totalorder %s23, 0
      %p92 = por %p90, %p91
      %s94 = sadd.s32 %s93, 1
      %p97 = scmp.eq.s32.totalorder %s17, 3
      %p98 = scmp.ne.s32.totalorder %s93, %s95
      %p99 = scmp.eq.s32.totalorder %s17, 0
      %p100 = por %p98, %p99
      %p101 = scmp.ne.s32.totalorder %s93, %s95
      %p102 = scmp.eq.s32.totalorder %s22, 3
      %p103 = por %p101, %p102
      %p104 = scmp.ne.s32.totalorder %s95, %s96
      %p105 = scmp.eq.s32.totalorder %s22, 0
      %p106 = por %p104, %p105
      %p107 = scmp.ne.s32.totalorder %s95, %s96
      %p108 = scmp.eq.s32.totalorder %s23, 3
      %p109 = por %p107, %p108
      %p111 = scmp.ne.s32.totalorder %s96, %s110
      %p112 = scmp.eq.s32.totalorder %s23, 0
      %p113 = por %p111, %p112
      %s115 = sadd.s32 %s114, 1
      %p118 = scmp.eq.s32.totalorder %s17, 3
      %p119 = scmp.ne.s32.totalorder %s114, %s116
      %p120 = scmp.eq.s32.totalorder %s17, 0
      %p121 = por %p119, %p120
      %p122 = scmp.ne.s32.totalorder %s114, %s116
      %p123 = scmp.eq.s32.totalorder %s22, 3
      %p124 = por %p122, %p123
      %p125 = scmp.ne.s32.totalorder %s116, %s117
      %p126 = scmp.eq.s32.totalorder %s22, 0
      %p127 = por %p125, %p126
      %p128 = scmp.ne.s32.totalorder %s116, %s117
      %p129 = scmp.eq.s32.totalorder %s23, 3
      %p130 = por %p128, %p129
      %p132 = scmp.ne.s32.totalorder %s117, %s131
      %p133 = scmp.eq.s32.totalorder %s23, 0
      %p134 = por %p132, %p133
      %s135 = ssub.s32 %s17, %s24
      %p136 = scmp.eq.s32.totalorder %s135, 0
      %s138 = sadd.s32 %s137, 1
      %s139 = scalar_select %p136, %s137, %s138
      %p142 = pneg %p136
      %p143 = scmp.eq.s32.totalorder %s17, 3
      %p144 = por %p142, %p143
      %p145 = scmp.ne.s32.totalorder %s137, %s140
      %p146 = scmp.eq.s32.totalorder %s17, 0
      %p147 = por %p145, %p146
      %p148 = scmp.ne.s32.totalorder %s137, %s140
      %p149 = scmp.eq.s32.totalorder %s22, 3
      %p150 = por %p148, %p149
      %p151 = scmp.ne.s32.totalorder %s140, %s141
      %p152 = scmp.eq.s32.totalorder %s22, 0
      %p153 = por %p151, %p152
      %p154 = scmp.ne.s32.totalorder %s140, %s141
      %p155 = scmp.eq.s32.totalorder %s23, 3
      %p156 = por %p154, %p155
      %p158 = scmp.ne.s32.totalorder %s141, %s157
      %p159 = scmp.eq.s32.totalorder %s23, 0
      %p160 = por %p158, %p159
      %p161 = scmp.le.s32.totalorder 1, %s17
      %p162 = scmp.lt.s32.totalorder %s17, 5
      %p163 = pnand %p161, %p162
      %p164 = pneg %p163
      // Predicated region
      $region9: #{tpu_custom_call.1} parent=5 // pred_check
        _
      $region10: #{tpu_custom_call.1} parent=5 // pred_check_branch
        %166 = sbr.rel (%p163) target = $region12
      $region11: #{tpu_custom_call.1} parent=5 // pred_region
        %s167 = ssub.s32 %s17, 1
        // Predicated region
        $region13: #{tpu_custom_call.1} parent=11 // pred_check
          %p168 = pneg %p64
        $region14: #{tpu_custom_call.1} parent=11 // pred_check_branch
          %170 = sbr.rel (%p168) target = $region16
        $region15: #{tpu_custom_call.1} parent=11 // pred_region
          _
        $region16: #{tpu_custom_call.1} parent=11 // pred_fallthru
          _
        // Predicated region
        $region17: #{tpu_custom_call.1} parent=11 // pred_check
          %p171 = pneg %p85
        $region18: #{tpu_custom_call.1} parent=11 // pred_check_branch
          %173 = sbr.rel (%p171) target = $region20
        $region19: #{tpu_custom_call.1} parent=11 // pred_region
          _
        $region20: #{tpu_custom_call.1} parent=11 // pred_fallthru
          _
        // Predicated region
        $region21: #{tpu_custom_call.1} parent=11 // pred_check
          %p174 = pneg %p106
        $region22: #{tpu_custom_call.1} parent=11 // pred_check_branch
          %176 = sbr.rel (%p174) target = $region24
        $region23: #{tpu_custom_call.1} parent=11 // pred_region
          _
        $region24: #{tpu_custom_call.1} parent=11 // pred_fallthru
          _
        // Predicated region
        $region25: #{tpu_custom_call.1} parent=11 // pred_check
          %p177 = pneg %p127
        $region26: #{tpu_custom_call.1} parent=11 // pred_check_branch
          %179 = sbr.rel (%p177) target = $region28
        $region27: #{tpu_custom_call.1} parent=11 // pred_region
          _
        $region28: #{tpu_custom_call.1} parent=11 // pred_fallthru
          _
      $region12: #{tpu_custom_call.1} parent=5 // pred_fallthru
        _
      %p180 = scmp.lt.s32.totalorder %s17, 4
      // Predicated region
      $region29: #{tpu_custom_call.1} parent=5 // pred_check
        %p181 = pneg %p180
      $region30: #{tpu_custom_call.1} parent=5 // pred_check_branch
        %183 = sbr.rel (%p181) target = $region32
      $region31: #{tpu_custom_call.1} parent=5 // pred_region
        // Predicated region
        $region33: #{tpu_custom_call.1} parent=31 // pred_check
          %p184 = pneg %p37
        $region34: #{tpu_custom_call.1} parent=31 // pred_check_branch
          %186 = sbr.rel (%p184) target = $region36
        $region35: #{tpu_custom_call.1} parent=31 // pred_region
          %s187 = sand.u32 %s27, 1
          %s188 = scalar_lea.sflag [#allocation3], %s187
          %s189 = sand.u32 %s27, 1
          %s190 = smul.addr %s189, 16
          %s191 = scalar_lea.vmem [#allocation2], %s190
          %s193 = ssub.s32 256, 256
          %194 = vsyncadd %s188, %s193
          %s195 = smul.addr %s17, 2
          %s196 = smul.addr %s195, 128
          %s197 = scalar_lea.hbm %s0, %s196
          %s199 = sshll.u32 %s191, 4
          %s200 = int_to_ptr.vmem [resolvable:$true] %s199
          %202 = dma.hbm_to_vmem [thread:$0]  %s197, 256, %s200, %s188
        $region36: #{tpu_custom_call.1} parent=31 // pred_fallthru
          _
      $region32: #{tpu_custom_call.1} parent=5 // pred_fallthru
        _
      %p203 = scmp.le.s32.totalorder 1, %s17
      %p204 = scmp.lt.s32.totalorder %s17, 5
      %p205 = pnand %p203, %p204
      %p206 = pneg %p205
      // Predicated region
      $region37: #{tpu_custom_call.1} parent=5 // pred_check
        _
      $region38: #{tpu_custom_call.1} parent=5 // pred_check_branch
        %208 = sbr.rel (%p205) target = $region40
      $region39: #{tpu_custom_call.1} parent=5 // pred_region
        %s209 = ssub.s32 %s17, 1
        %s210 = sand.u32 %s30, 1
        %s211 = scalar_lea.sflag [#allocation3], %s210
        %s212 = sand.u32 %s30, 1
        %s213 = smul.addr %s212, 16
        %s214 = scalar_lea.vmem [#allocation2], %s213
        // Predicated region
        $region41: #{tpu_custom_call.1} parent=39 // pred_check
          %p215 = pneg %p43
        $region42: #{tpu_custom_call.1} parent=39 // pred_check_branch
          %217 = sbr.rel (%p215) target = $region44
        $region43: #{tpu_custom_call.1} parent=39 // pred_region
          %218 = dma.done %s211, 256
        $region44: #{tpu_custom_call.1} parent=39 // pred_fallthru
          _
        %s219 = sand.u32 %s30, 1
        %s220 = scalar_lea.sflag [#allocation3], %s219
        %s221 = sand.u32 %s30, 1
        %s222 = smul.addr %s221, 16
        %s223 = scalar_lea.vmem [#allocation2], %s222
        %p224 = pneg %p43
        %p225 = pneg %p40
        %p226 = pneg %p64
        %p227 = pneg %p61
        %p228 = pneg %p85
        %p229 = pneg %p82
        %p230 = pneg %p106
        %p231 = pneg %p103
        %p232 = pneg %p127
        %p233 = pneg %p124
        %p234 = pneg %p153
        %p235 = pneg %p150
        %s236 = sand.u32 %s140, 1
        %s237 = scalar_lea.sflag [#allocation4], %s236
        %s238 = sand.u32 %s140, 1
        %s239 = smul.addr %s238, 2
        %s240 = scalar_lea.vmem [#allocation5], %s239
        %v241 = vld [vmem:[%s214] sm:$0xff]
        %v242 = vld [vmem:[%s214 + $0x8] sm:$0xff]
        %v243 = vld [vmem:[%s1] sm:$0xff]
        %v244 = vld [vmem:[%s1 + $0x8] sm:$0xff]
        %v245 = vld [vmem:[%s1 + $0x10] sm:$0xff]
        %v246 = vld [vmem:[%s1 + $0x18] sm:$0xff]
        %v247 = vld [vmem:[%s1 + $0x20] sm:$0xff]
        %v248 = vld [vmem:[%s1 + $0x28] sm:$0xff]
        %v249 = vld [vmem:[%s1 + $0x30] sm:$0xff]
        %v250 = vld [vmem:[%s1 + $0x38] sm:$0xff]
        %v251 = vld [vmem:[%s1 + $0x40] sm:$0xff]
        %v252 = vld [vmem:[%s1 + $0x48] sm:$0xff]
        %v253 = vld [vmem:[%s1 + $0x50] sm:$0xff]
        %v254 = vld [vmem:[%s1 + $0x58] sm:$0xff]
        %v255 = vld [vmem:[%s1 + $0x60] sm:$0xff]
        %v256 = vld [vmem:[%s1 + $0x68] sm:$0xff]
        %v257 = vld [vmem:[%s1 + $0x70] sm:$0xff]
        %v258 = vld [vmem:[%s1 + $0x78] sm:$0xff]
        %v259 = vld [vmem:[%s1 + $0x80] sm:$0xff]
        %v260 = vld [vmem:[%s1 + $0x88] sm:$0xff]
        %v261 = vld [vmem:[%s1 + $0x90] sm:$0xff]
        %v262 = vld [vmem:[%s1 + $0x98] sm:$0xff]
        %v263 = vld [vmem:[%s1 + $0xa0] sm:$0xff]
        %v264 = vld [vmem:[%s1 + $0xa8] sm:$0xff]
        %v265 = vld [vmem:[%s1 + $0xb0] sm:$0xff]
        %v266 = vld [vmem:[%s1 + $0xb8] sm:$0xff]
        %v267 = vld [vmem:[%s1 + $0xc0] sm:$0xff]
        %v268 = vld [vmem:[%s1 + $0xc8] sm:$0xff]
        %v269 = vld [vmem:[%s1 + $0xd0] sm:$0xff]
        %v270 = vld [vmem:[%s1 + $0xd8] sm:$0xff]
        %v271 = vld [vmem:[%s1 + $0xe0] sm:$0xff]
        %v272 = vld [vmem:[%s1 + $0xe8] sm:$0xff]
        %v273 = vld [vmem:[%s1 + $0xf0] sm:$0xff]
        %v274 = vld [vmem:[%s1 + $0xf8] sm:$0xff]
        %v275 = vpack.c.bf16 %v241, %v241
        %v276 = vpack.c.bf16 %v242, %v242
        %v277 = vld [vmem:[%s2] sm:$0x3]
        %v279 = vlaneseq
        %v280 = vshrl.u32 %v279, 7
        %v281 = vsub.s32 0, %v280
        %v282 = vrot.slane %v277, %v281
        %v283 = vlaneseq
        %v284 = vshrl.u32 %v283, 7
        %v285 = vsub.s32 1, %v284
        %v286 = vrot.slane %v277, %v285
        %v321 = vunpack.c.l.b16 %v243
        %v322 = vunpack.c.h.b16 %v243
        %v323 = vunpack.c.l.b16 %v244
        %v324 = vunpack.c.h.b16 %v244
        %v325 = vunpack.c.l.b16 %v245
        %v326 = vunpack.c.h.b16 %v245
        %v327 = vunpack.c.l.b16 %v246
        %v328 = vunpack.c.h.b16 %v246
        %v329 = vunpack.c.l.b16 %v247
        %v330 = vunpack.c.h.b16 %v247
        %v331 = vunpack.c.l.b16 %v248
        %v332 = vunpack.c.h.b16 %v248
        %v333 = vunpack.c.l.b16 %v249
        %v334 = vunpack.c.h.b16 %v249
        %v335 = vunpack.c.l.b16 %v250
        %v336 = vunpack.c.h.b16 %v250
        %v337 = vunpack.c.l.b16 %v251
        %v338 = vunpack.c.h.b16 %v251
        %v339 = vunpack.c.l.b16 %v252
        %v340 = vunpack.c.h.b16 %v252
        %v341 = vunpack.c.l.b16 %v253
        %v342 = vunpack.c.h.b16 %v253
        %v343 = vunpack.c.l.b16 %v254
        %v344 = vunpack.c.h.b16 %v254
        %v345 = vunpack.c.l.b16 %v255
        %v346 = vunpack.c.h.b16 %v255
        %v347 = vunpack.c.l.b16 %v256
        %v348 = vunpack.c.h.b16 %v256
        %v349 = vunpack.c.l.b16 %v257
        %v350 = vunpack.c.h.b16 %v257
        %v351 = vunpack.c.l.b16 %v258
        %v352 = vunpack.c.h.b16 %v258
        %v353 = vunpack.c.l.b16 %v259
        %v354 = vunpack.c.h.b16 %v259
        %v355 = vunpack.c.l.b16 %v260
        %v356 = vunpack.c.h.b16 %v260
        %v357 = vunpack.c.l.b16 %v261
        %v358 = vunpack.c.h.b16 %v261
        %v359 = vunpack.c.l.b16 %v262
        %v360 = vunpack.c.h.b16 %v262
        %v361 = vunpack.c.l.b16 %v263
        %v362 = vunpack.c.h.b16 %v263
        %v363 = vunpack.c.l.b16 %v264
        %v364 = vunpack.c.h.b16 %v264
        %v365 = vunpack.c.l.b16 %v265
        %v366 = vunpack.c.h.b16 %v265
        %v367 = vunpack.c.l.b16 %v266
        %v368 = vunpack.c.h.b16 %v266
        %v369 = vunpack.c.l.b16 %v267
        %v370 = vunpack.c.h.b16 %v267
        %v371 = vunpack.c.l.b16 %v268
        %v372 = vunpack.c.h.b16 %v268
        %v373 = vunpack.c.l.b16 %v269
        %v374 = vunpack.c.h.b16 %v269
        %v375 = vunpack.c.l.b16 %v270
        %v376 = vunpack.c.h.b16 %v270
        %v377 = vunpack.c.l.b16 %v271
        %v378 = vunpack.c.h.b16 %v271
        %v379 = vunpack.c.l.b16 %v272
        %v380 = vunpack.c.h.b16 %v272
        %v381 = vunpack.c.l.b16 %v273
        %v382 = vunpack.c.h.b16 %v273
        %v383 = vunpack.c.l.b16 %v274
        %v384 = vunpack.c.h.b16 %v274
        %v385 = vpack.c.b16 %v323, %v321
        %v386 = vpack.c.b16 %v324, %v322
        %v387 = vpack.c.b16 %v327, %v325
        %v388 = vpack.c.b16 %v328, %v326
        %v389 = vpack.c.b16 %v331, %v329
        %v390 = vpack.c.b16 %v332, %v330
        %v391 = vpack.c.b16 %v335, %v333
        %v392 = vpack.c.b16 %v336, %v334
        %v393 = vpack.c.b16 %v339, %v337
        %v394 = vpack.c.b16 %v340, %v338
        %v395 = vpack.c.b16 %v343, %v341
        %v396 = vpack.c.b16 %v344, %v342
        %v397 = vpack.c.b16 %v347, %v345
        %v398 = vpack.c.b16 %v348, %v346
        %v399 = vpack.c.b16 %v351, %v349
        %v400 = vpack.c.b16 %v352, %v350
        %v401 = vpack.c.b16 %v355, %v353
        %v402 = vpack.c.b16 %v356, %v354
        %v403 = vpack.c.b16 %v359, %v357
        %v404 = vpack.c.b16 %v360, %v358
        %v405 = vpack.c.b16 %v363, %v361
        %v406 = vpack.c.b16 %v364, %v362
        %v407 = vpack.c.b16 %v367, %v365
        %v408 = vpack.c.b16 %v368, %v366
        %v409 = vpack.c.b16 %v371, %v369
        %v410 = vpack.c.b16 %v372, %v370
        %v411 = vpack.c.b16 %v375, %v373
        %v412 = vpack.c.b16 %v376, %v374
        %v413 = vpack.c.b16 %v379, %v377
        %v414 = vpack.c.b16 %v380, %v378
        %v415 = vpack.c.b16 %v383, %v381
        %v416 = vpack.c.b16 %v384, %v382
        %449 = vmatprep.subr.bf16.mxu0 %v386
        %450 = vmatpush1.bf16.msra.mxu0 %v385
        %451 = vmatprep.subr.bf16.mxu0 %v388
        %452 = vmatpush1.bf16.msra.mxu0 %v387
        %453 = vmatprep.subr.bf16.mxu0 %v390
        %454 = vmatpush1.bf16.msra.mxu0 %v389
        %455 = vmatprep.subr.bf16.mxu0 %v392
        %456 = vmatpush1.bf16.msra.mxu0 %v391
        %457 = vmatprep.subr.bf16.mxu0 %v394
        %458 = vmatpush1.bf16.msra.mxu0 %v393
        %459 = vmatprep.subr.bf16.mxu0 %v396
        %460 = vmatpush1.bf16.msra.mxu0 %v395
        %461 = vmatprep.subr.bf16.mxu0 %v398
        %462 = vmatpush1.bf16.msra.mxu0 %v397
        %463 = vmatprep.subr.bf16.mxu0 %v400
        %464 = vmatpush1.bf16.msra.mxu0 %v399
        %465 = vmatprep.subr.bf16.mxu0 %v402
        %466 = vmatpush1.bf16.msra.mxu0 %v401
        %467 = vmatprep.subr.bf16.mxu0 %v404
        %468 = vmatpush1.bf16.msra.mxu0 %v403
        %469 = vmatprep.subr.bf16.mxu0 %v406
        %470 = vmatpush1.bf16.msra.mxu0 %v405
        %471 = vmatprep.subr.bf16.mxu0 %v408
        %472 = vmatpush1.bf16.msra.mxu0 %v407
        %473 = vmatprep.subr.bf16.mxu0 %v410
        %474 = vmatpush1.bf16.msra.mxu0 %v409
        %475 = vmatprep.subr.bf16.mxu0 %v412
        %476 = vmatpush1.bf16.msra.mxu0 %v411
        %477 = vmatprep.subr.bf16.mxu0 %v414
        %478 = vmatpush1.bf16.msra.mxu0 %v413
        %479 = vmatprep.subr.bf16.mxu0 %v416
        %480 = vmatpush1.bf16.msra.mxu0 %v415
        %481 = vmatprep.mubr.bf16.mxu0 %v276
        %482 = vmatmul.mubr.bf16.gmra.mrb[0].mxu0 %v275
        %v483 = vpop.f32.mrb[0].mxu0
        %v484 = vadd.f32 %v282, %v483
        %v485 = vpop.f32.mrb[0].mxu0
        %v486 = vadd.f32 %v286, %v485
        %v487 = vpop.f32.mrb[0].mxu0
        %v488 = vpop.f32.mrb[0].mxu0
        %489 = vdwg.mxu0
        %v490 = vtanh.pop %v484
        %v491 = vtanh.pop %v486
        %v492 = vld [vmem:[%s3] sm:$0xff]
        %v493 = vld [vmem:[%s3 + $0x8] sm:$0xff]
        %v494 = vld [vmem:[%s3 + $0x10] sm:$0xff]
        %v495 = vld [vmem:[%s3 + $0x18] sm:$0xff]
        %v496 = vld [vmem:[%s3 + $0x20] sm:$0xff]
        %v497 = vld [vmem:[%s3 + $0x28] sm:$0xff]
        %v498 = vld [vmem:[%s3 + $0x30] sm:$0xff]
        %v499 = vld [vmem:[%s3 + $0x38] sm:$0xff]
        %v500 = vld [vmem:[%s3 + $0x40] sm:$0xff]
        %v501 = vld [vmem:[%s3 + $0x48] sm:$0xff]
        %v502 = vld [vmem:[%s3 + $0x50] sm:$0xff]
        %v503 = vld [vmem:[%s3 + $0x58] sm:$0xff]
        %v504 = vld [vmem:[%s3 + $0x60] sm:$0xff]
        %v505 = vld [vmem:[%s3 + $0x68] sm:$0xff]
        %v506 = vld [vmem:[%s3 + $0x70] sm:$0xff]
        %v507 = vld [vmem:[%s3 + $0x78] sm:$0xff]
        %v508 = vld [vmem:[%s3 + $0x80] sm:$0xff]
        %v509 = vld [vmem:[%s3 + $0x88] sm:$0xff]
        %v510 = vld [vmem:[%s3 + $0x90] sm:$0xff]
        %v511 = vld [vmem:[%s3 + $0x98] sm:$0xff]
        %v512 = vld [vmem:[%s3 + $0xa0] sm:$0xff]
        %v513 = vld [vmem:[%s3 + $0xa8] sm:$0xff]
        %v514 = vld [vmem:[%s3 + $0xb0] sm:$0xff]
        %v515 = vld [vmem:[%s3 + $0xb8] sm:$0xff]
        %v516 = vld [vmem:[%s3 + $0xc0] sm:$0xff]
        %v517 = vld [vmem:[%s3 + $0xc8] sm:$0xff]
        %v518 = vld [vmem:[%s3 + $0xd0] sm:$0xff]
        %v519 = vld [vmem:[%s3 + $0xd8] sm:$0xff]
        %v520 = vld [vmem:[%s3 + $0xe0] sm:$0xff]
        %v521 = vld [vmem:[%s3 + $0xe8] sm:$0xff]
        %v522 = vld [vmem:[%s3 + $0xf0] sm:$0xff]
        %v523 = vld [vmem:[%s3 + $0xf8] sm:$0xff]
        %524 = vmatprep.subr.mxu0 0.0
        %525 = vmatpush1.msra.mxu0 %v492
        %526 = vmatprep.subr.mxu0 0.0
        %527 = vmatpush1.msra.mxu0 %v493
        %528 = vmatprep.subr.mxu0 0.0
        %529 = vmatpush1.msra.mxu0 %v494
        %530 = vmatprep.subr.mxu0 0.0
        %531 = vmatpush1.msra.mxu0 %v495
        %532 = vmatprep.subr.mxu0 0.0
        %533 = vmatpush1.msra.mxu0 %v496
        %534 = vmatprep.subr.mxu0 0.0
        %535 = vmatpush1.msra.mxu0 %v497
        %536 = vmatprep.subr.mxu0 0.0
        %537 = vmatpush1.msra.mxu0 %v498
        %538 = vmatprep.subr.mxu0 0.0
        %539 = vmatpush1.msra.mxu0 %v499
        %540 = vmatprep.subr.mxu0 0.0
        %541 = vmatpush1.msra.mxu0 %v500
        %542 = vmatprep.subr.mxu0 0.0
        %543 = vmatpush1.msra.mxu0 %v501
        %544 = vmatprep.subr.mxu0 0.0
        %545 = vmatpush1.msra.mxu0 %v502
        %546 = vmatprep.subr.mxu0 0.0
        %547 = vmatpush1.msra.mxu0 %v503
        %548 = vmatprep.subr.mxu0 0.0
        %549 = vmatpush1.msra.mxu0 %v504
        %550 = vmatprep.subr.mxu0 0.0
        %551 = vmatpush1.msra.mxu0 %v505
        %552 = vmatprep.subr.mxu0 0.0
        %553 = vmatpush1.msra.mxu0 %v506
        %554 = vmatprep.subr.mxu0 0.0
        %555 = vmatpush1.msra.mxu0 %v507
        %556 = vmatprep.subr.mxu0 0.0
        %557 = vmatpush1.msra.mxu0 %v508
        %558 = vmatprep.subr.mxu0 0.0
        %559 = vmatpush1.msra.mxu0 %v509
        %560 = vmatprep.subr.mxu0 0.0
        %561 = vmatpush1.msra.mxu0 %v510
        %562 = vmatprep.subr.mxu0 0.0
        %563 = vmatpush1.msra.mxu0 %v511
        %564 = vmatprep.subr.mxu0 0.0
        %565 = vmatpush1.msra.mxu0 %v512
        %566 = vmatprep.subr.mxu0 0.0
        %567 = vmatpush1.msra.mxu0 %v513
        %568 = vmatprep.subr.mxu0 0.0
        %569 = vmatpush1.msra.mxu0 %v514
        %570 = vmatprep.subr.mxu0 0.0
        %571 = vmatpush1.msra.mxu0 %v515
        %572 = vmatprep.subr.mxu0 0.0
        %573 = vmatpush1.msra.mxu0 %v516
        %574 = vmatprep.subr.mxu0 0.0
        %575 = vmatpush1.msra.mxu0 %v517
        %576 = vmatprep.subr.mxu0 0.0
        %577 = vmatpush1.msra.mxu0 %v518
        %578 = vmatprep.subr.mxu0 0.0
        %579 = vmatpush1.msra.mxu0 %v519
        %580 = vmatprep.subr.mxu0 0.0
        %581 = vmatpush1.msra.mxu0 %v520
        %582 = vmatprep.subr.mxu0 0.0
        %583 = vmatpush1.msra.mxu0 %v521
        %584 = vmatprep.subr.mxu0 0.0
        %585 = vmatpush1.msra.mxu0 %v522
        %586 = vmatprep.subr.mxu0 0.0
        %587 = vmatpush1.msra.mxu0 %v523
        %588 = vmatprep.mubr.f32.mxu0 %v491
        %589 = vmatmul.mubr.f32.gmra.mrb[0].mxu0 %v490
        %v590 = vpop.f32.mrb[0].mxu0
        %v591 = vadd.f32 0.0, %v590
        %v592 = vpop.f32.mrb[0].mxu0
        %593 = vdwg.mxu0
        %vm594 = vcmask 64512
        %v595 = vsel %vm594, %v591, -inf
        %v596 = vrot.slane %v595, 4
        %v597 = vmax.f32 %v595, %v596
        %v598 = vrot.slane %v597, 2
        %v599 = vmax.f32 %v597, %v598
        %v600 = vrot.slane %v599, 1
        %v601 = vmax.f32 %v599, %v600
        %v602 = vsub.f32 %v591, %v601
        %v603 = vsel %vm594, %v602, -inf
        %604 = vmax.xlane.f32.xlu0 %v603
        %v605 = vpop.xlane.xlu0 %604
        %v606 = vsub.f32 %v602, %v605
        %v607 = vmul.f32 %v606, 1.442695
        %v608 = vpow.pop %v607
        %v609 = vsel %vm594, %v608, 0.0
        %610 = vadd.xlane.f32.xlu0 %v609
        %v611 = vpop.xlane.xlu0 %610
        %v612 = vrcp.pop %v611
        %v613 = vmul.f32 %v608, %v612
        %v614 = vld [vmem:[%s4] sm:$0xff]
        %v615 = vld [vmem:[%s4 + $0x8] sm:$0xff]
        %v617 = vsel %vm594, %v613, 0
        %619 = vmatprep.subr.mxu0 %v615
        %620 = vmatpush1.msra.mxu0 %v614
        %621 = vmatprep.subr.mxu0 0.0
        %622 = vmatpush1.msra.mxu0 0.0
        %623 = vmatprep.subr.mxu0 0.0
        %624 = vmatpush1.msra.mxu0 0.0
        %625 = vmatprep.subr.mxu0 0.0
        %626 = vmatpush1.msra.mxu0 0.0
        %627 = vmatprep.subr.mxu0 0.0
        %628 = vmatpush1.msra.mxu0 0.0
        %629 = vmatprep.subr.mxu0 0.0
        %630 = vmatpush1.msra.mxu0 0.0
        %631 = vmatprep.subr.mxu0 0.0
        %632 = vmatpush1.msra.mxu0 0.0
        %633 = vmatprep.subr.mxu0 0.0
        %634 = vmatpush1.msra.mxu0 0.0
        %635 = vmatprep.subr.mxu0 0.0
        %636 = vmatpush1.msra.mxu0 0.0
        %637 = vmatprep.subr.mxu0 0.0
        %638 = vmatpush1.msra.mxu0 0.0
        %639 = vmatprep.subr.mxu0 0.0
        %640 = vmatpush1.msra.mxu0 0.0
        %641 = vmatprep.subr.mxu0 0.0
        %642 = vmatpush1.msra.mxu0 0.0
        %643 = vmatprep.subr.mxu0 0.0
        %644 = vmatpush1.msra.mxu0 0.0
        %645 = vmatprep.subr.mxu0 0.0
        %646 = vmatpush1.msra.mxu0 0.0
        %647 = vmatprep.subr.mxu0 0.0
        %648 = vmatpush1.msra.mxu0 0.0
        %649 = vmatprep.subr.mxu0 0.0
        %650 = vmatpush1.msra.mxu0 0.0
        %651 = vmatprep.subr.mxu0 0.0
        %652 = vmatpush1.msra.mxu0 0.0
        %653 = vmatprep.subr.mxu0 0.0
        %654 = vmatpush1.msra.mxu0 0.0
        %655 = vmatprep.subr.mxu0 0.0
        %656 = vmatpush1.msra.mxu0 0.0
        %657 = vmatprep.subr.mxu0 0.0
        %658 = vmatpush1.msra.mxu0 0.0
        %659 = vmatprep.subr.mxu0 0.0
        %660 = vmatpush1.msra.mxu0 0.0
        %661 = vmatprep.subr.mxu0 0.0
        %662 = vmatpush1.msra.mxu0 0.0
        %663 = vmatprep.subr.mxu0 0.0
        %664 = vmatpush1.msra.mxu0 0.0
        %665 = vmatprep.subr.mxu0 0.0
        %666 = vmatpush1.msra.mxu0 0.0
        %667 = vmatprep.subr.mxu0 0.0
        %668 = vmatpush1.msra.mxu0 0.0
        %669 = vmatprep.subr.mxu0 0.0
        %670 = vmatpush1.msra.mxu0 0.0
        %671 = vmatprep.subr.mxu0 0.0
        %672 = vmatpush1.msra.mxu0 0.0
        %673 = vmatprep.subr.mxu0 0.0
        %674 = vmatpush1.msra.mxu0 0.0
        %675 = vmatprep.subr.mxu0 0.0
        %676 = vmatpush1.msra.mxu0 0.0
        %677 = vmatprep.subr.mxu0 0.0
        %678 = vmatpush1.msra.mxu0 0.0
        %679 = vmatprep.subr.mxu0 0.0
        %680 = vmatpush1.msra.mxu0 0.0
        %681 = vmatprep.subr.mxu0 0.0
        %682 = vmatpush1.msra.mxu0 0.0
        %683 = vmatprep.mubr.f32.mxu0 0.0
        %684 = vmatmul.mubr.f32.gmra.mrb[0].mxu0 %v617
        %v685 = vpop.f32.mrb[0].mxu0
        %v686 = vadd.f32 0.0, %v685
        %v687 = vpop.f32.mrb[0].mxu0
        %v688 = vadd.f32 0.0, %v687
        %689 = vdwg.mxu0
        %v690 = vmul.f32 %v686, %v241
        %v691 = vmul.f32 %v688, %v242
        %v692 = vrot.slane %v690, 4
        %v693 = vadd.f32 %v690, %v692
        %v694 = vrot.slane %v693, 2
        %v695 = vadd.f32 %v693, %v694
        %v696 = vrot.slane %v695, 1
        %v697 = vadd.f32 %v695, %v696
        %v698 = vrot.slane %v691, 4
        %v699 = vadd.f32 %v691, %v698
        %v700 = vrot.slane %v699, 2
        %v701 = vadd.f32 %v699, %v700
        %v702 = vrot.slane %v701, 1
        %v703 = vadd.f32 %v701, %v702
        %v706 = vcombine.low %v697, %v703
        %v708 = vunpack.c.l.s4 1966171168
        %v709 = vunpack.c.0.s8 %v708
        %v710 = vlaneseq
        %v711 = vshrl.u32 %v710, 7
        %v712 = vsub.s32 %v709, %v711
        %v713 = vrot.slane %v706, %v712
        %v715 = vunpack.c.l.s4 1966171168
        %v716 = vunpack.c.0.s8 %v715
        %v717 = vlaneseq
        %v718 = vshrl.u32 %v717, 7
        %v719 = vsub.s32 %v716, %v718
        %v720 = vrot.slane %v713, %v719
        %v722 = vlaneseq
        %vm723 = vcmp.ge.s32.totalorder %v722, 0
        %vm724 = vcmp.lt.s32.totalorder %v722, 256
        %vm725 = vmand %vm723, %vm724
        %726 = vst.msk [vmem:[%s240] sm:$0x3] %vm725, %v720
        %s727 = sand.u32 %s140, 1
        %s728 = scalar_lea.sflag [#allocation4], %s727
        %s729 = sand.u32 %s140, 1
        %s730 = smul.addr %s729, 2
        %s731 = scalar_lea.vmem [#allocation5], %s730
        // Predicated region
        $region45: #{tpu_custom_call.1} parent=39 // pred_check
          %p732 = pneg %p150
        $region46: #{tpu_custom_call.1} parent=39 // pred_check_branch
          %734 = sbr.rel (%p732) target = $region48
        $region47: #{tpu_custom_call.1} parent=39 // pred_region
          %s736 = ssub.s32 32, 32
          %737 = vsyncadd %s728, %s736
          %s738 = smul.addr %s22, 2
          %s739 = smul.addr %s738, 16
          %s740 = scalar_lea.hbm %s5, %s739
          %s742 = sshll.u32 %s731, 4
          %s743 = int_to_ptr.vmem [resolvable:$true] %s742
          %745 = dma.vmem_to_hbm [thread:$0]  %s743, 32, %s740, %s728
        $region48: #{tpu_custom_call.1} parent=39 // pred_fallthru
          _
      $region40: #{tpu_custom_call.1} parent=5 // pred_fallthru
        _
      %p746 = scmp.le.s32.totalorder 2, %s17
      // Predicated region
      $region49: #{tpu_custom_call.1} parent=5 // pred_check
        %p747 = pneg %p746
      $region50: #{tpu_custom_call.1} parent=5 // pred_check_branch
        %749 = sbr.rel (%p747) target = $region52
      $region51: #{tpu_custom_call.1} parent=5 // pred_region
        %s750 = ssub.s32 %s17, 2
        // Predicated region
        $region53: #{tpu_custom_call.1} parent=51 // pred_check
          %p751 = pneg %p156
        $region54: #{tpu_custom_call.1} parent=51 // pred_check_branch
          %753 = sbr.rel (%p751) target = $region56
        $region55: #{tpu_custom_call.1} parent=51 // pred_region
          %s754 = sand.u32 %s141, 1
          %s755 = scalar_lea.sflag [#allocation4], %s754
          %s756 = sand.u32 %s141, 1
          %s757 = smul.addr %s756, 2
          %s758 = scalar_lea.vmem [#allocation5], %s757
          %759 = dma.done %s755, 32
        $region56: #{tpu_custom_call.1} parent=51 // pred_fallthru
          _
      $region52: #{tpu_custom_call.1} parent=5 // pred_fallthru
        _
    $region6: #{tpu_custom_call.1} parent=1 // loop_footer
      %s21 = sadd.s32 1, %s17
    $region7: #{tpu_custom_call.1} parent=1 // loop_footer_branch
      %16 = sbr.rel target = $region3
    $region8: #{tpu_custom_call.1} parent=1 // loop_exit
      _
    %760 = vsyncpa [#allocation3], 1
    %s761 = scalar_lea.sflag [#allocation3], 1
    %762 = vsyncpa %s761, 1
    %763 = vsyncpa [#allocation4], 1
    %s764 = scalar_lea.sflag [#allocation4], 1
    %765 = vsyncpa %s764, 1

</llo_original>
